<compile_context>
chip_gen: v5e
topology: v5e:2x2
jax: 0.10.0
libtpu: 0.0.40
codegen_flags: <defaults>
</compile_context>

<pallas_src>
import functools

import jax
import jax.numpy as jnp
from jax.experimental import pallas as pl
from jax.experimental.pallas import tpu as pltpu


def _round_up(x, m):
    return ((x + m - 1) // m) * m


def _pad2(x, rows, cols):
    return jnp.pad(x, ((0, rows - x.shape[0]), (0, cols - x.shape[1])))


def _pick_tile_m(n_dst, max_tile=512):
    tile_m = min(max_tile, _round_up(n_dst, 8))
    n_dst_pad = _round_up(n_dst, tile_m)
    # v7x: ensure >= 2 dst-row tiles so the "parallel" axis spans both TCs.
    if n_dst_pad // tile_m < 2 and tile_m > 8:
        tile_m = _round_up(tile_m // 2, 8)
        n_dst_pad = _round_up(n_dst, tile_m)
    return tile_m, n_dst_pad


# ----------------------------------------------------------------------------
# Pallas kernel: K-tiled matmul with accumulator init from the precomputed
# root path.  Grid axes: (dst-row tile i [parallel], K tile k [arbitrary]).
# ----------------------------------------------------------------------------
def _sage_agg_kernel(a_ref, xw_ref, root_ref, out_ref, acc_ref, *,
                     tile_k, xw_resident):
    k = pl.program_id(1)

    @pl.when(k == 0)
    def _init():
        # Root-weight path + summed bias (pre-scaled by 1/R), computed in XLA.
        acc_ref[...] = root_ref[...]

    if xw_resident:
        ks = pl.multiple_of(k * tile_k, tile_k)
        xw = xw_ref[pl.ds(ks, tile_k), :]
    else:
        xw = xw_ref[...]
    # bf16 operands, f32 accumulation on the MXU.
    acc_ref[...] += jnp.dot(a_ref[...], xw, preferred_element_type=jnp.float32)

    @pl.when(k == pl.num_programs(1) - 1)
    def _finalize():
        out_ref[...] = acc_ref[...].astype(out_ref.dtype)


def hetero_sage_dst(a_cat, xw_cat, root, tile_m, tile_k, xw_resident):
    """a_cat  [n_dst_pad, k_pad]   bf16  (relation-concatenated, 1/deg weights)
       xw_cat [k_pad, h_pad]       bf16  (x_src @ Wl / R, relation-concatenated)
       root   [n_dst_pad, h_pad]   f32   ((x_dst @ Wr_sum + bl_sum) / R)
    """
    n_dst_pad, k_pad = a_cat.shape
    h_pad = xw_cat.shape[1]
    assert n_dst_pad % tile_m == 0 and k_pad % tile_k == 0

    if xw_resident:
        # DMA'd once, resident for the whole grid; sliced in-kernel per k tile.
        xw_spec = pl.BlockSpec((k_pad, h_pad), lambda i, k: (0, 0))
        xw_blk_bytes = k_pad * h_pad * 2
    else:
        xw_spec = pl.BlockSpec((tile_k, h_pad), lambda i, k: (k, 0))
        xw_blk_bytes = tile_k * h_pad * 2

    # Scoped-VMEM budget from the actual block sizes (double-buffered inputs /
    # output, plus the f32 accumulator), with 2x slack; clamp to 64 MiB so it
    # stays below physical VMEM on every generation (v7x has 64 MiB).
    a_blk = tile_m * tile_k * 2
    root_blk = tile_m * h_pad * 4
    out_blk = tile_m * h_pad * 4
    acc_blk = tile_m * h_pad * 4
    need = 2 * (a_blk + xw_blk_bytes + root_blk + out_blk) + acc_blk
    vmem_limit = int(min(max(2 * need + (4 << 20), 16 << 20), 64 << 20))

    kernel = functools.partial(_sage_agg_kernel, tile_k=tile_k,
                               xw_resident=xw_resident)

    return pl.pallas_call(
        kernel,
        out_shape=jax.ShapeDtypeStruct((n_dst_pad, h_pad), jnp.float32),
        grid_spec=pltpu.PrefetchScalarGridSpec(
            num_scalar_prefetch=0,
            grid=(n_dst_pad // tile_m, k_pad // tile_k),
            in_specs=[
                pl.BlockSpec((tile_m, tile_k), lambda i, k: (i, k)),
                xw_spec,
                pl.BlockSpec((tile_m, h_pad), lambda i, k: (i, 0)),
            ],
            out_specs=pl.BlockSpec((tile_m, h_pad), lambda i, k: (i, 0)),
            scratch_shapes=[pltpu.VMEM((tile_m, h_pad), jnp.float32)],
        ),
        compiler_params=pltpu.CompilerParams(
            dimension_semantics=("parallel", "arbitrary"),
            vmem_limit_bytes=vmem_limit,
        ),
    )(a_cat, xw_cat, root)


# ----------------------------------------------------------------------------
# Glue: dense normalized (mean) aggregation matrix from edge_index [2, E].
# A[d, s] = (# edges s->d) / (# edges with dst d), 0 if no incoming edges.
# TODO(synk): switch to CSR gather + segment-sum for large graphs.
# ----------------------------------------------------------------------------
def mean_agg_matrix(edge_index, n_src, n_dst):
    src, dst = edge_index[0], edge_index[1]
    counts = jnp.zeros((n_dst, n_src), jnp.float32).at[dst, src].add(1.0)
    deg = counts.sum(axis=1, keepdims=True)
    return counts / jnp.where(deg == 0.0, 1.0, deg)


# ----------------------------------------------------------------------------
# Model: deterministic parameter init + forward
# ----------------------------------------------------------------------------
class Graph2FeatPallas:
    def __init__(self, key, edge_type_list, in_dims, hidden):
        self.hidden = hidden
        self.edge_type_list = edge_type_list
        self.params = {}
        for et in edge_type_list:
            src_t, _, dst_t = et
            key, k1, k2, k3 = jax.random.split(key, 4)
            f_src, f_dst = in_dims[src_t], in_dims[dst_t]
            self.params[et] = {
                "Wl": jax.random.normal(k1, (f_src, hidden), jnp.float32) * 0.1,
                "bl": jax.random.normal(k2, (1, hidden), jnp.float32) * 0.1,
                "Wr": jax.random.normal(k3, (f_dst, hidden), jnp.float32) * 0.1,
            }

    def _group_by_dst(self):
        by_dst = {}
        for et in self.edge_type_list:
            by_dst.setdefault(et[2], []).append(et)
        return by_dst

    def __call__(self, x_dict, edge_dict):
        h_pad = _round_up(self.hidden, 128)
        z_dict = {}
        for dst_t, ets in self._group_by_dst().items():
            x_dst = x_dict[dst_t]
            n_dst, f_dst = x_dst.shape
            num_rel = len(ets)
            inv_r = 1.0 / num_rel

            tile_m, n_dst_pad = _pick_tile_m(n_dst)

            # Per-relation projection hoisted out of the kernel; relation axis
            # folded into the contraction (K) dimension.
            a_segs, xw_segs = [], []
            wr_sum = jnp.zeros((f_dst, self.hidden), jnp.float32)
            bl_sum = jnp.zeros((1, self.hidden), jnp.float32)
            for et in ets:
                src_t = et[0]
                x_src = x_dict[src_t]
                p = self.params[et]
                a_segs.append(mean_agg_matrix(edge_dict[et], x_src.shape[0], n_dst))
                xw_segs.append(x_src @ (p["Wl"] * inv_r))   # 1/R pre-folded
                wr_sum = wr_sum + p["Wr"]
                bl_sum = bl_sum + p["bl"]

            a_cat = jnp.concatenate(a_segs, axis=1)    # [n_dst, K]
            xw_cat = jnp.concatenate(xw_segs, axis=0)  # [K, hidden]
            K = a_cat.shape[1]
            tile_k = min(512, _round_up(K, 128))
            k_pad = _round_up(K, tile_k)

            # Root path, exact in f32, fed as the accumulator init.
            root = x_dst @ (wr_sum * inv_r) + bl_sum * inv_r

            # bf16 MXU operands (f32 accumulation inside the kernel).
            a_pad = _pad2(a_cat, n_dst_pad, k_pad).astype(jnp.bfloat16)
            xw_pad = _pad2(xw_cat, k_pad, h_pad).astype(jnp.bfloat16)
            root_pad = _pad2(root, n_dst_pad, h_pad)

            # Keep XW resident (single DMA) when small; otherwise K-tile it.
            xw_resident = (k_pad * h_pad * 2) <= (4 << 20)

            out_pad = hetero_sage_dst(a_pad, xw_pad, root_pad,
                                      tile_m, tile_k, xw_resident)
            z_dict[dst_t] = out_pad[:n_dst, : self.hidden]
        return z_dict

    # Pure-JAX reference for verification (unoptimized, math as specified).
    def reference(self, x_dict, edge_dict):
        z_dict = {}
        for dst_t, ets in self._group_by_dst().items():
            x_dst = x_dict[dst_t]
            outs = []
            for et in ets:
                src_t = et[0]
                x_src = x_dict[src_t]
                A = mean_agg_matrix(edge_dict[et], x_src.shape[0], x_dst.shape[0])
                p = self.params[et]
                outs.append(A @ x_src @ p["Wl"] + p["bl"] + x_dst @ p["Wr"])
            z_dict[dst_t] = sum(outs) / len(outs)
        return z_dict


if __name__ == "__main__":
    key = jax.random.PRNGKey(0)

    # Node counts / feature dims consistent with the module's edge_dict example:
    # 'a': 10 nodes, 'b': 5 nodes, 'c': 3 nodes.
    n_nodes = {"a": 10, "b": 5, "c": 3}
    in_dims = {"a": 16, "b": 8, "c": 12}
    hidden = 32
    edge_type_list = [("a", "a-b", "b"), ("a", "a-c", "c"), ("c", "c-b", "b")]
    num_edges = {("a", "a-b", "b"): 15, ("a", "a-c", "c"): 10, ("c", "c-b", "b"): 5}

    key, *ks = jax.random.split(key, 8)
    x_dict = {
        "a": jax.random.normal(ks[0], (n_nodes["a"], in_dims["a"]), jnp.float32),
        "b": jax.random.normal(ks[1], (n_nodes["b"], in_dims["b"]), jnp.float32),
        "c": jax.random.normal(ks[2], (n_nodes["c"], in_dims["c"]), jnp.float32),
    }
    edge_dict = {}
    for i, et in enumerate(edge_type_list):
        src_t, _, dst_t = et
        e = num_edges[et]
        k_s, k_d = jax.random.split(ks[3 + i])
        src = jax.random.randint(k_s, (e,), 0, n_nodes[src_t], jnp.int32)
        dst = jax.random.randint(k_d, (e,), 0, n_nodes[dst_t], jnp.int32)
        edge_dict[et] = jnp.stack([src, dst])

    key, pkey = jax.random.split(key)
    model = Graph2FeatPallas(pkey, edge_type_list, in_dims, hidden)

    z_dict = model(x_dict, edge_dict)
    z_dict = {k: jax.block_until_ready(v) for k, v in z_dict.items()}

    # Correctness check against the pure-JAX f32 reference.  bf16 MXU operands
    # (A weights, XW) with f32 accumulation => looser tolerance than exact.
    z_ref = model.reference(x_dict, edge_dict)
    for k in z_dict:
        assert z_dict[k].shape == (n_nodes[k], hidden)
        assert jnp.allclose(z_dict[k], z_ref[k], atol=2e-2, rtol=2e-2)

    # TODO(synk): unused __init__ submodules (PReLU, lin, em_dict, bn) are not in
    # the forward path and are intentionally not implemented.
    print("KERNEL_OK")
</pallas_src>

<mosaic_0001>
module attributes {stable_mosaic.version = 11 : i64} {
  func.func @_sage_agg_kernel(%arg0: i32, %arg1: i32, %arg2: memref<8x128xbf16, #tpu.memory_space<vmem>>, %arg3: memref<128x128xbf16, #tpu.memory_space<vmem>>, %arg4: memref<8x128xf32, #tpu.memory_space<vmem>>, %arg5: memref<8x128xf32, #tpu.memory_space<vmem>>, %arg6: memref<8x128xf32, #tpu.memory_space<vmem>>) attributes {dimension_semantics = [#tpu.dimension_semantics<parallel>, #tpu.dimension_semantics<arbitrary>], iteration_bounds = array<i64: 1, 1>, scalar_prefetch = 0 : i64, scratch_operands = 1 : i64, tpu.core_type = #tpu.core_type<tc>, window_params = [{transform_indices = @transform_0, window_bounds = array<i64: 8, 128>}, {pipeline_mode = #tpu.pipeline_mode<synchronous>, transform_indices = @transform_1, window_bounds = array<i64: 128, 128>}, {transform_indices = @transform_2, window_bounds = array<i64: 8, 128>}, {transform_indices = @transform_3, window_bounds = array<i64: 8, 128>}]} {
    %c0_i32 = arith.constant 0 : i32
    %0 = arith.cmpi eq, %arg1, %c0_i32 : i32
    %1 = arith.extui %0 : i1 to i32
    %c0_i32_0 = arith.constant 0 : i32
    %2 = arith.cmpi ne, %1, %c0_i32_0 : i32
    scf.if %2 {
      %c0_9 = arith.constant 0 : index
      %c0_10 = arith.constant 0 : index
      %15 = vector.load %arg4[%c0_9, %c0_10] : memref<8x128xf32, #tpu.memory_space<vmem>>, vector<8x128xf32>
      %c0_11 = arith.constant 0 : index
      %c0_12 = arith.constant 0 : index
      %16 = vector.load %arg6[%c0_11, %c0_12] : memref<8x128xf32, #tpu.memory_space<vmem>>, vector<8x128xf32>
      tpu.vector_store %arg6[%c0_11, %c0_12], %15 {strides = array<i32>} : memref<8x128xf32, #tpu.memory_space<vmem>>, vector<8x128xf32>,
    } else {
    }
    %c128_i32 = arith.constant 128 : i32
    %3 = arith.muli %arg1, %c128_i32 : i32
    %4 = tpu.assume_multiple %3, 128 : i32
    %5 = arith.index_cast %4 : i32 to index
    %c0 = arith.constant 0 : index
    %6 = vector.load %arg3[%5, %c0] : memref<128x128xbf16, #tpu.memory_space<vmem>>, vector<128x128xbf16>
    %c0_1 = arith.constant 0 : index
    %c0_2 = arith.constant 0 : index
    %7 = vector.load %arg6[%c0_1, %c0_2] : memref<8x128xf32, #tpu.memory_space<vmem>>, vector<8x128xf32>
    %c0_3 = arith.constant 0 : index
    %c0_4 = arith.constant 0 : index
    %8 = vector.load %arg2[%c0_3, %c0_4] : memref<8x128xbf16, #tpu.memory_space<vmem>>, vector<8x128xbf16>
    %cst = arith.constant dense<0.000000e+00> : vector<8x128xf32>
    %9 = tpu.matmul %8, %6, %cst {dimension_numbers = #tpu.dot_dimension_numbers<[1], [0], [0], [1], [0, 0, 1, 1], [], []>} : vector<8x128xbf16>, vector<128x128xbf16>, vector<8x128xf32> -> vector<8x128xf32>
    %10 = arith.addf %7, %9 : vector<8x128xf32>
    %c0_5 = arith.constant 0 : index
    %c0_6 = arith.constant 0 : index
    %11 = vector.load %arg6[%c0_5, %c0_6] : memref<8x128xf32, #tpu.memory_space<vmem>>, vector<8x128xf32>
    tpu.vector_store %arg6[%c0_5, %c0_6], %10 {strides = array<i32>} : memref<8x128xf32, #tpu.memory_space<vmem>>, vector<8x128xf32>,
    %c0_i32_7 = arith.constant 0 : i32
    %12 = arith.cmpi eq, %arg1, %c0_i32_7 : i32
    %13 = arith.extui %12 : i1 to i32
    %c0_i32_8 = arith.constant 0 : i32
    %14 = arith.cmpi ne, %13, %c0_i32_8 : i32
    scf.if %14 {
      %c0_9 = arith.constant 0 : index
      %c0_10 = arith.constant 0 : index
      %15 = vector.load %arg6[%c0_9, %c0_10] : memref<8x128xf32, #tpu.memory_space<vmem>>, vector<8x128xf32>
      %c0_11 = arith.constant 0 : index
      %c0_12 = arith.constant 0 : index
      %16 = vector.load %arg5[%c0_11, %c0_12] : memref<8x128xf32, #tpu.memory_space<vmem>>, vector<8x128xf32>
      tpu.vector_store %arg5[%c0_11, %c0_12], %15 {strides = array<i32>} : memref<8x128xf32, #tpu.memory_space<vmem>>, vector<8x128xf32>,
    } else {
    }
    return
  }
  func.func @transform_0(%arg0: i32, %arg1: i32) -> (i32, i32) {
    %c0_i32 = arith.constant 0 : i32
    return %arg0, %arg1 : i32, i32
  }
  func.func @transform_1(%arg0: i32, %arg1: i32) -> (i32, i32) {
    %c0_i32 = arith.constant 0 : i32
    %c0_i32_0 = arith.constant 0 : i32
    %c0_i32_1 = arith.constant 0 : i32
    return %c0_i32, %c0_i32_0 : i32, i32
  }
  func.func @transform_2(%arg0: i32, %arg1: i32) -> (i32, i32) {
    %c0_i32 = arith.constant 0 : i32
    %c0_i32_0 = arith.constant 0 : i32
    return %arg0, %c0_i32 : i32, i32
  }
  func.func @transform_3(%arg0: i32, %arg1: i32) -> (i32, i32) {
    %c0_i32 = arith.constant 0 : i32
    %c0_i32_0 = arith.constant 0 : i32
    return %arg0, %c0_i32 : i32, i32
  }
}

</mosaic_0001>

<llo_original>
// kernel: tpu_custom_call.1
$region0: #{tpu_custom_call.1}
  #allocation0 [shape = 'u32[]', space=smem, size = 0x4, offset = 0x4, fixed_abs, tag = 'smem constant byte address 0x4 - core index']
  #allocation1 [shape = 'u32[72,128]{1,0:T(1,128)}', space=vmem, size = 0x9000, scoped, tag = 'internal scratch']
  #allocation2 [shape = 'f32[8,128]{1,0:T(8,128)}', space=vmem, size = 0x1000, scoped, tag = 'scratch operand']
  %s0 = inlined_call_operand.hbm [shape: bf16[8,128], index: 0, kind: input, shape index: {}]
  %s1 = inlined_call_operand.hbm [shape: bf16[128,128], index: 1, kind: input, shape index: {}]
  %s2 = inlined_call_operand.hbm [shape: f32[8,128], index: 2, kind: input, shape index: {}]
  %s3 = inlined_call_operand.hbm [shape: f32[8,128], index: 3, kind: output, shape index: {}]
  %s4 = sld [smem:[#allocation0]]
  $region42: #{tpu_custom_call.1} parent=0
    _
  %s6 = ssub.s32 1, %s4
  %s7 = scalar_select 0, %s6, %s4
  $region1: #{tpu_custom_call.1} parent=0
    #allocation3 [shape = 'u8[2048]{0}', space=vmem, size = 0x800, scoped, tag = 'input window, operand 0, single buffered']
    #allocation4 [shape = 's32[1]{0}', space=sflag, size = 0x4, scoped, tag = 'scoped memory for tpu_custom_call.1']
    #allocation5 [shape = 's32[1]{0}', space=sflag, size = 0x4, scoped, tag = 'scoped memory for tpu_custom_call.1']
    #allocation6 [shape = 'u8[32768]{0}', space=vmem, size = 0x8000, scoped, tag = 'input window, operand 1, single buffered']
    #allocation7 [shape = 's32[1]{0}', space=sflag, size = 0x4, scoped, tag = 'scoped memory for tpu_custom_call.1']
    #allocation8 [shape = 'u8[4096]{0}', space=vmem, size = 0x1000, scoped, tag = 'input window, operand 2, single buffered']
    #allocation9 [shape = 'u8[4096]{0}', space=vmem, size = 0x1000, scoped, tag = 'output window, operand 0, single buffered']
    %8 = vsyncpa [#allocation4], 0
    %9 = vsyncpa [#allocation7], 0
    %10 = vsyncpa [#allocation5], 0
    // Predicated region
    $region2: #{tpu_custom_call.1} parent=1 // pred_check
      _
    $region3: #{tpu_custom_call.1} parent=1 // pred_check_branch
      %12 = sbr.rel (0) target = $region5
    $region4: #{tpu_custom_call.1} parent=1 // pred_region
      %14 = vsyncadd [#allocation4], 0
      %s16 = sshll.u32 %s0, 4
      %s17 = int_to_ptr.hbm [resolvable:$true] %s16
      %s18 = sshll.u32 [#allocation3], 4
      %s19 = int_to_ptr.vmem [resolvable:$true] %s18
      %21 = dma.hbm_to_vmem [thread:$0]  %s17, 64, %s19, [#allocation4]
    $region5: #{tpu_custom_call.1} parent=1 // pred_fallthru
      _
    // Predicated region
    $region6: #{tpu_custom_call.1} parent=1 // pred_check
      _
    $region7: #{tpu_custom_call.1} parent=1 // pred_check_branch
      %23 = sbr.rel (0) target = $region9
    $region8: #{tpu_custom_call.1} parent=1 // pred_region
      %25 = vsyncadd [#allocation7], 0
      %s26 = sshll.u32 %s1, 4
      %s27 = int_to_ptr.hbm [resolvable:$true] %s26
      %s28 = sshll.u32 [#allocation6], 4
      %s29 = int_to_ptr.vmem [resolvable:$true] %s28
      %34 = dma.hbm_to_vmem [thread:$0]  %s27, 1024, %s29, [#allocation7], 64, 64, 4
    $region9: #{tpu_custom_call.1} parent=1 // pred_fallthru
      _
    // Predicated region
    $region10: #{tpu_custom_call.1} parent=1 // pred_check
      _
    $region11: #{tpu_custom_call.1} parent=1 // pred_check_branch
      %36 = sbr.rel (0) target = $region13
    $region12: #{tpu_custom_call.1} parent=1 // pred_region
      %38 = vsyncadd [#allocation7], 0
      %s40 = sshll.u32 %s2, 4
      %s41 = int_to_ptr.hbm [resolvable:$true] %s40
      %s42 = sshll.u32 [#allocation8], 4
      %s43 = int_to_ptr.vmem [resolvable:$true] %s42
      %45 = dma.hbm_to_vmem [thread:$0]  %s41, 128, %s43, [#allocation7]
    $region13: #{tpu_custom_call.1} parent=1 // pred_fallthru
      _
    // Predicated region
    $region14: #{tpu_custom_call.1} parent=1 // pred_check
      _
    $region15: #{tpu_custom_call.1} parent=1 // pred_check_branch
      %47 = sbr.rel (0) target = $region17
    $region16: #{tpu_custom_call.1} parent=1 // pred_region
      %49 = dma.done [#allocation4], 64
    $region17: #{tpu_custom_call.1} parent=1 // pred_fallthru
      _
    // Predicated region
    $region18: #{tpu_custom_call.1} parent=1 // pred_check
      _
    $region19: #{tpu_custom_call.1} parent=1 // pred_check_branch
      %51 = sbr.rel (0) target = $region21
    $region20: #{tpu_custom_call.1} parent=1 // pred_region
      %53 = dma.done [#allocation7], 1024
    $region21: #{tpu_custom_call.1} parent=1 // pred_fallthru
      _
    // Predicated region
    $region22: #{tpu_custom_call.1} parent=1 // pred_check
      _
    $region23: #{tpu_custom_call.1} parent=1 // pred_check_branch
      %55 = sbr.rel (0) target = $region25
    $region24: #{tpu_custom_call.1} parent=1 // pred_region
      %57 = dma.done [#allocation7], 128
    $region25: #{tpu_custom_call.1} parent=1 // pred_fallthru
      _
    %p58 = scmp.eq.s32.totalorder 0, 0
    // Predicated region
    $region26: #{tpu_custom_call.1} parent=1 // pred_check
      %p59 = pneg %p58
    $region27: #{tpu_custom_call.1} parent=1 // pred_check_branch
      %61 = sbr.rel (%p59) target = $region29
    $region28: #{tpu_custom_call.1} parent=1 // pred_region
      %v62 = vld [vmem:[#allocation8] sm:$0xff]
      %63 = vst [vmem:[#allocation2] sm:$0xff] %v62
    $region29: #{tpu_custom_call.1} parent=1 // pred_fallthru
      _
    %s64 = smul.u32 0, 128
    %s65 = sshra.s32 %s64, 3
    %s66 = sand.u32 %s64, 7
    %s67 = smul.addr %s65, 4
    %s68 = scalar_lea.vmem [#allocation6], %s67
    %v69 = vld [vmem:[%s68] sm:$0xf]
    %v70 = vld [vmem:[%s68 + $0x4] sm:$0xf]
    %v71 = vld [vmem:[%s68 + $0x8] sm:$0xf]
    %v72 = vld [vmem:[%s68 + $0xc] sm:$0xf]
    %v73 = vld [vmem:[%s68 + $0x10] sm:$0xf]
    %v74 = vld [vmem:[%s68 + $0x14] sm:$0xf]
    %v75 = vld [vmem:[%s68 + $0x18] sm:$0xf]
    %v76 = vld [vmem:[%s68 + $0x1c] sm:$0xf]
    %v77 = vld [vmem:[%s68 + $0x20] sm:$0xf]
    %v78 = vld [vmem:[%s68 + $0x24] sm:$0xf]
    %v79 = vld [vmem:[%s68 + $0x28] sm:$0xf]
    %v80 = vld [vmem:[%s68 + $0x2c] sm:$0xf]
    %v81 = vld [vmem:[%s68 + $0x30] sm:$0xf]
    %v82 = vld [vmem:[%s68 + $0x34] sm:$0xf]
    %v83 = vld [vmem:[%s68 + $0x38] sm:$0xf]
    %v84 = vld [vmem:[%s68 + $0x3c] sm:$0xf]
    %v85 = vld [vmem:[#allocation2] sm:$0xff]
    %v86 = vld [vmem:[#allocation3] sm:$0xf]
    %v103 = vunpack.c.l.b16 %v69
    %v104 = vunpack.c.l.b16 %v70
    %v105 = vunpack.c.l.b16 %v71
    %v106 = vunpack.c.l.b16 %v72
    %v107 = vunpack.c.l.b16 %v73
    %v108 = vunpack.c.l.b16 %v74
    %v109 = vunpack.c.l.b16 %v75
    %v110 = vunpack.c.l.b16 %v76
    %v111 = vunpack.c.l.b16 %v77
    %v112 = vunpack.c.l.b16 %v78
    %v113 = vunpack.c.l.b16 %v79
    %v114 = vunpack.c.l.b16 %v80
    %v115 = vunpack.c.l.b16 %v81
    %v116 = vunpack.c.l.b16 %v82
    %v117 = vunpack.c.l.b16 %v83
    %v118 = vunpack.c.l.b16 %v84
    %v119 = vpack.c.b16 %v104, %v103
    %v120 = vpack.c.b16 %v106, %v105
    %v121 = vpack.c.b16 %v108, %v107
    %v122 = vpack.c.b16 %v110, %v109
    %v123 = vpack.c.b16 %v112, %v111
    %v124 = vpack.c.b16 %v114, %v113
    %v125 = vpack.c.b16 %v116, %v115
    %v126 = vpack.c.b16 %v118, %v117
    %135 = vmatpush.bf16.msra.mxu0 %v126
    %136 = vmatpush.bf16.msra.mxu0 %v125
    %137 = vmatpush.bf16.msra.mxu0 %v124
    %138 = vmatpush.bf16.msra.mxu0 %v123
    %139 = vmatpush.bf16.msra.mxu0 %v122
    %140 = vmatpush.bf16.msra.mxu0 %v121
    %141 = vmatpush.bf16.msra.mxu0 %v120
    %142 = vmatpush.bf16.msra.mxu0 %v119
    %143 = vmatmul.bf16.gmra.mxu0 %v86
    %v144 = vpop.f32.mrf.mxu0
    %v145 = vadd.f32 0.0, %v144
    %v146 = vpop.f32.mrf.mxu0
    %147 = vdwg.mxu0
    %v148 = vadd.f32 %v85, %v145
    %149 = vst [vmem:[#allocation2] sm:$0xff] %v148
    // Predicated region
    $region30: #{tpu_custom_call.1} parent=1 // pred_check
      %p150 = pneg %p58
    $region31: #{tpu_custom_call.1} parent=1 // pred_check_branch
      %152 = sbr.rel (%p150) target = $region33
    $region32: #{tpu_custom_call.1} parent=1 // pred_region
      %v153 = vld [vmem:[#allocation2] sm:$0xff]
      %154 = vst [vmem:[#allocation9] sm:$0xff] %v153
    $region33: #{tpu_custom_call.1} parent=1 // pred_fallthru
      _
    // Predicated region
    $region34: #{tpu_custom_call.1} parent=1 // pred_check
      _
    $region35: #{tpu_custom_call.1} parent=1 // pred_check_branch
      %156 = sbr.rel (0) target = $region37
    $region36: #{tpu_custom_call.1} parent=1 // pred_region
      %158 = vsyncadd [#allocation5], 0
      %s160 = sshll.u32 [#allocation9], 4
      %s161 = int_to_ptr.vmem [resolvable:$true] %s160
      %s162 = sshll.u32 %s3, 4
      %s163 = int_to_ptr.hbm [resolvable:$true] %s162
      %165 = dma.vmem_to_hbm [thread:$0]  %s161, 128, %s163, [#allocation5]
    $region37: #{tpu_custom_call.1} parent=1 // pred_fallthru
      _
    // Predicated region
    $region38: #{tpu_custom_call.1} parent=1 // pred_check
      _
    $region39: #{tpu_custom_call.1} parent=1 // pred_check_branch
      %167 = sbr.rel (0) target = $region41
    $region40: #{tpu_custom_call.1} parent=1 // pred_region
      %169 = dma.done [#allocation5], 128
    $region41: #{tpu_custom_call.1} parent=1 // pred_fallthru
      _
    %170 = vsyncpa [#allocation4], 1
    %171 = vsyncpa [#allocation7], 1
    %172 = vsyncpa [#allocation5], 1

</llo_original>
